<compile_context>
chip_gen: v7x
topology: tpu7x:2x2x1
jax: 0.10.0
libtpu: 0.0.40
codegen_flags: <defaults>
</compile_context>

<pallas_src>
import math

import jax
import jax.numpy as jnp
from jax.experimental import pallas as pl
from jax.experimental.pallas import tpu as pltpu


def _rup(n, m):
    return ((n + m - 1) // m) * m


def _vmem_tile_bytes(shape, dtype):
    r, c = shape
    return _rup(max(int(r), 1), 8) * _rup(max(int(c), 1), 128) * jnp.dtype(dtype).itemsize


# ----------------------------------------------------------------------------- weights
def prepare_projector_params(conv_w, weights, biases, *, fold_conv=None,
                             lane_pad=128, compute_dtype=jnp.bfloat16,
                             fold_bytes_limit=8 << 20):
    """One-time weight prep: conv fold (if small enough), 128-lane zero padding, bf16 cast.

    conv_w:  (1, S, 3)   PyTorch Conv1d(seq_len, 1, 3) weight
    weights: [W1 (H0, 2E), ..., W_out (O, H_last)]  (PyTorch (out, in) layout)
    biases:  [b1 (H0,), ..., b_hl (H_last,), None]
    """
    S = conv_w.shape[1]
    W1 = jnp.asarray(weights[0], jnp.float32)            # (H0, 2E)
    H0, E2 = W1.shape
    E = E2 // 2
    n_hidden = len(weights) - 1

    wc = jnp.asarray(conv_w, jnp.float32)[0]              # (S, 3)
    W1a_T = W1[:, :E].T                                   # (E, H0) conv half
    W1b_T = W1[:, E:].T                                   # (E, H0) stats half

    H0p = _rup(H0, lane_pad)
    if fold_conv is None:
        fold_conv = S * E * H0p * jnp.dtype(compute_dtype).itemsize <= fold_bytes_limit

    if fold_conv:
        # Conv is linear and feeds the Linear with no nonlinearity in between, so fold it:
        #   M1[s, e', j] = sum_k wc[s, k] * W1a_T[(e' + 1 - k) % E, j]
        M1 = sum(wc[:, k][:, None, None] * jnp.roll(W1a_T, k - 1, axis=0)[None]
                 for k in range(3))                        # (S, E, H0)
        W_top = M1.reshape(S * E, H0)
    else:
        W_top = W1a_T                                      # conv done in the wrapper instead

    def pad_w(w, rows_p, cols_p):
        return jnp.pad(w, ((0, rows_p - w.shape[0]), (0, cols_p - w.shape[1]))).astype(compute_dtype)

    def pad_b(b, cols_p):
        b = jnp.asarray(b, jnp.float32)
        return jnp.pad(b, (0, cols_p - b.shape[0])).reshape(1, -1)   # f32 bias row

    params = [pad_w(W_top, W_top.shape[0], H0p),
              pad_w(W1b_T, W1b_T.shape[0], H0p),
              pad_b(biases[0], H0p)]

    prev, prev_p = H0, H0p
    for i in range(1, n_hidden):
        Wi = jnp.asarray(weights[i], jnp.float32).T        # (H_{i-1}, H_i)
        Hi = Wi.shape[1]
        Hip = _rup(Hi, lane_pad)
        params.append(pad_w(Wi, prev_p, Hip))              # zero rows for padded inputs
        params.append(pad_b(biases[i], Hip))
        prev, prev_p = Hi, Hip

    Wo = jnp.asarray(weights[-1], jnp.float32).T           # (H_last, O)
    O = Wo.shape[1]
    Op = _rup(O, lane_pad)
    params.append(pad_w(Wo, prev_p, Op))

    return dict(params=tuple(params), n_hidden=n_hidden, fold_conv=bool(fold_conv),
                conv_w=wc, S=S, E=E, out_dim=O, out_dim_padded=Op,
                compute_dtype=compute_dtype)


# ----------------------------------------------------------------------------- kernel
def _make_projector_kernel(n_hidden, compute_dtype):
    """relu(x@W_top + stats@W_stats + b0) -> [relu(h@Wi + bi)]*(n_hidden-1) -> h@W_out."""

    def kernel(x_ref, s_ref, *refs):
        o_ref = refs[-1]
        p = refs[:-1]
        # Layer 1: two bf16 MXU dots into one f32 accumulator (no wrapper-side concat).
        h = jnp.dot(x_ref[...].astype(compute_dtype), p[0][...],
                    preferred_element_type=jnp.float32)
        h = h + jnp.dot(s_ref[...].astype(compute_dtype), p[1][...],
                        preferred_element_type=jnp.float32)
        h = jnp.maximum(h + p[2][...], 0.0)                 # bias + ReLU in f32 (VPU)
        k = 3
        for _ in range(n_hidden - 1):
            h = jnp.dot(h.astype(compute_dtype), p[k][...],
                        preferred_element_type=jnp.float32)
            h = jnp.maximum(h + p[k + 1][...], 0.0)
            k += 2
        y = jnp.dot(h.astype(compute_dtype), p[k][...],
                    preferred_element_type=jnp.float32)      # output Linear, no bias
        o_ref[...] = y.astype(o_ref.dtype)

    return kernel


# ----------------------------------------------------------------------------- wrapper
def projector_forward(x, stats, prepared, *, row_tile=512):
    B, S, E = x.shape
    assert S == prepared["S"] and E == prepared["E"]
    params = prepared["params"]
    n_hidden = prepared["n_hidden"]
    cdt = prepared["compute_dtype"]
    O, Op = prepared["out_dim"], prepared["out_dim_padded"]

    if prepared["fold_conv"]:
        x_feat = x.reshape(B, S * E).astype(jnp.float32)     # free view, no HBM copy
    else:
        # Large S*E fallback: do the (linear) circular conv in one pass here so the
        # kernel only streams (B, E) features and keeps W_top tiny.
        # TODO(synk): fully fuse via in-kernel pltpu.roll if this extra dispatch matters.
        wc = prepared["conv_w"]
        x_pad = jnp.concatenate([x[:, :, -1:], x, x[:, :, :1]], axis=2)
        x_feat = sum(jnp.einsum("bse,s->be", x_pad[:, :, k:k + E], wc[:, k])
                     for k in range(3)).astype(jnp.float32)
    stats2 = stats.reshape(B, E).astype(jnp.float32)
    Kx = x_feat.shape[1]

    # --- row tile: sublane-aligned, >=2 grid steps when possible (v7x megacore) ---
    B8 = max(8, _rup(B, 8))
    TB = min(row_tile, B8)
    if B8 > 8 and B8 <= TB:
        TB = max(8, _rup((B8 + 1) // 2, 8))

    param_bytes = sum(_vmem_tile_bytes(p.shape, p.dtype) for p in params)

    def footprint(tb):
        act = 2 * _vmem_tile_bytes((tb, Kx), jnp.float32)    # double-buffered x block
        act += 2 * _vmem_tile_bytes((tb, E), jnp.float32)    # double-buffered stats block
        act += 2 * _vmem_tile_bytes((tb, Op), jnp.float32)   # double-buffered out block
        return param_bytes + act

    VMEM_BUDGET = 24 << 20                                   # conservative (v7x 64 MiB phys)
    while TB > 8 and footprint(TB) > VMEM_BUDGET:
        TB = max(8, _rup(TB // 2, 8))

    B_pad = _rup(B, TB)
    if B_pad != B:
        x_feat = jnp.pad(x_feat, ((0, B_pad - B), (0, 0)))
        stats2 = jnp.pad(stats2, ((0, B_pad - B), (0, 0)))

    vmem_limit = int(min(max(footprint(TB) + (8 << 20), 32 << 20), 48 << 20))

    def build(single_buffer_params):
        in_specs = [pl.BlockSpec((TB, Kx), lambda i: (i, 0)),
                    pl.BlockSpec((TB, E), lambda i: (i, 0))]
        for p in params:
            if single_buffer_params:
                # Constant index_map -> VMEM-resident; single-buffer to not waste VMEM.
                in_specs.append(pl.BlockSpec(p.shape, lambda i: (0, 0),
                                             pipeline_mode=pl.Buffered(1)))
            else:
                in_specs.append(pl.BlockSpec(p.shape, lambda i: (0, 0)))
        return pl.pallas_call(
            _make_projector_kernel(n_hidden, cdt),
            out_shape=jax.ShapeDtypeStruct((B_pad, Op), jnp.float32),
            grid_spec=pltpu.PrefetchScalarGridSpec(
                num_scalar_prefetch=0,
                grid=(B_pad // TB,),
                in_specs=in_specs,
                out_specs=pl.BlockSpec((TB, Op), lambda i: (i, 0)),
            ),
            compiler_params=pltpu.CompilerParams(
                dimension_semantics=("parallel",),
                vmem_limit_bytes=vmem_limit,
            ),
        )

    try:
        out = build(True)(x_feat, stats2, *params)
    except Exception:
        # pipeline_mode=pl.Buffered(1) unsupported on this jax version -> default buffering.
        out = build(False)(x_feat, stats2, *params)

    return out[:B, :O]


# ----------------------------------------------------------------------------- reference
def _reference(x, stats, conv_w, weights, biases):
    """Pure-JAX f32 reference mirroring the PyTorch forward op-for-op."""
    B, S, E = x.shape
    x_pad = jnp.concatenate([x[:, :, -1:], x, x[:, :, :1]], axis=2)     # circular pad=1
    conv = sum(jnp.einsum("bse,s->be", x_pad[:, :, k:k + E], conv_w[0, :, k])
               for k in range(3))                                        # (B, E)
    h = jnp.concatenate([conv, stats.reshape(B, E)], axis=1)             # (B, 2E)
    for i in range(len(weights) - 1):
        h = jnp.maximum(h @ weights[i].T + biases[i], 0.0)
    return h @ weights[-1].T


if __name__ == "__main__":
    # Projector(enc_in=4, seq_len=8, hidden_dims=[32, 32], hidden_layers=2, output_dim=8)
    B, S, E = 2, 8, 4
    hidden_dims = [32, 32]
    output_dim = 8

    key = jax.random.PRNGKey(0)
    ks = jax.random.split(key, 16)

    x = jax.random.normal(ks[0], (B, S, E), dtype=jnp.float32)
    stats = jax.random.normal(ks[1], (B, 1, E), dtype=jnp.float32)
    conv_w = 0.1 * jax.random.normal(ks[2], (1, S, 3), dtype=jnp.float32)   # Conv1d(S,1,3)

    dims = [2 * E] + hidden_dims + [output_dim]
    weights, biases = [], []
    kidx = 3
    for i in range(len(dims) - 1):
        std = 1.0 / math.sqrt(dims[i])
        weights.append(std * jax.random.normal(ks[kidx], (dims[i + 1], dims[i]), dtype=jnp.float32))
        kidx += 1
        if i < len(dims) - 2:
            biases.append(std * jax.random.normal(ks[kidx], (dims[i + 1],), dtype=jnp.float32))
            kidx += 1
        else:
            biases.append(None)                              # final Linear has bias=False

    ref = _reference(x, stats, conv_w, weights, biases)

    # Folded-conv path (small S*E: conv folded exactly into layer 1).
    prepared = prepare_projector_params(conv_w, weights, biases)
    out = jax.block_until_ready(projector_forward(x, stats, prepared))
    assert out.shape == (B, output_dim), out.shape
    assert jnp.allclose(out, ref, atol=5e-2, rtol=5e-2), "folded path mismatch vs reference"

    # Unfolded fallback path (large-S*E configuration; conv done in the wrapper).
    prepared_nf = prepare_projector_params(conv_w, weights, biases, fold_conv=False)
    out_nf = jax.block_until_ready(projector_forward(x, stats, prepared_nf))
    assert jnp.allclose(out_nf, ref, atol=5e-2, rtol=5e-2), "unfolded path mismatch vs reference"

    # Larger batch: exercises row padding and a multi-step (megacore-shardable) grid.
    B2 = 20
    x2 = jax.random.normal(ks[12], (B2, S, E), dtype=jnp.float32)
    st2 = jax.random.normal(ks[13], (B2, 1, E), dtype=jnp.float32)
    out2 = jax.block_until_ready(projector_forward(x2, st2, prepared))
    ref2 = _reference(x2, st2, conv_w, weights, biases)
    assert out2.shape == (B2, output_dim), out2.shape
    assert jnp.allclose(out2, ref2, atol=5e-2, rtol=5e-2), "batched path mismatch vs reference"

    print("KERNEL_OK")
</pallas_src>

<mosaic_0001>
module attributes {stable_mosaic.version = 11 : i64} {
  func.func @kernel(%arg0: i32, %arg1: memref<8x32xf32, #tpu.memory_space<vmem>>, %arg2: memref<8x4xf32, #tpu.memory_space<vmem>>, %arg3: memref<32x128xbf16, #tpu.memory_space<vmem>>, %arg4: memref<4x128xbf16, #tpu.memory_space<vmem>>, %arg5: memref<1x128xf32, #tpu.memory_space<vmem>>, %arg6: memref<128x128xbf16, #tpu.memory_space<vmem>>, %arg7: memref<1x128xf32, #tpu.memory_space<vmem>>, %arg8: memref<128x128xbf16, #tpu.memory_space<vmem>>, %arg9: memref<8x128xf32, #tpu.memory_space<vmem>>) attributes {dimension_semantics = [#tpu.dimension_semantics<parallel>], iteration_bounds = array<i64: 1>, scalar_prefetch = 0 : i64, scratch_operands = 0 : i64, tpu.core_type = #tpu.core_type<tc>, window_params = [{transform_indices = @transform_0, window_bounds = array<i64: 8, 32>}, {transform_indices = @transform_1, window_bounds = array<i64: 8, 4>}, {pipeline_mode = #tpu.pipeline_mode<synchronous>, transform_indices = @transform_2, window_bounds = array<i64: 32, 128>}, {pipeline_mode = #tpu.pipeline_mode<synchronous>, transform_indices = @transform_3, window_bounds = array<i64: 4, 128>}, {pipeline_mode = #tpu.pipeline_mode<synchronous>, transform_indices = @transform_4, window_bounds = array<i64: 1, 128>}, {pipeline_mode = #tpu.pipeline_mode<synchronous>, transform_indices = @transform_5, window_bounds = array<i64: 128, 128>}, {pipeline_mode = #tpu.pipeline_mode<synchronous>, transform_indices = @transform_6, window_bounds = array<i64: 1, 128>}, {pipeline_mode = #tpu.pipeline_mode<synchronous>, transform_indices = @transform_7, window_bounds = array<i64: 128, 128>}, {transform_indices = @transform_8, window_bounds = array<i64: 8, 128>}]} {
    %c0 = arith.constant 0 : index
    %c0_0 = arith.constant 0 : index
    %0 = vector.load %arg1[%c0, %c0_0] : memref<8x32xf32, #tpu.memory_space<vmem>>, vector<8x32xf32>
    %1 = arith.truncf %0 : vector<8x32xf32> to vector<8x32xbf16>
    %c0_1 = arith.constant 0 : index
    %c0_2 = arith.constant 0 : index
    %2 = vector.load %arg3[%c0_1, %c0_2] : memref<32x128xbf16, #tpu.memory_space<vmem>>, vector<32x128xbf16>
    %cst = arith.constant dense<0.000000e+00> : vector<8x128xf32>
    %3 = tpu.matmul %1, %2, %cst {dimension_numbers = #tpu.dot_dimension_numbers<[1], [0], [0], [1], [0, 0, 1, 1], [], []>} : vector<8x32xbf16>, vector<32x128xbf16>, vector<8x128xf32> -> vector<8x128xf32>
    %c0_3 = arith.constant 0 : index
    %c0_4 = arith.constant 0 : index
    %4 = vector.load %arg2[%c0_3, %c0_4] : memref<8x4xf32, #tpu.memory_space<vmem>>, vector<8x4xf32>
    %5 = arith.truncf %4 : vector<8x4xf32> to vector<8x4xbf16>
    %c0_5 = arith.constant 0 : index
    %c0_6 = arith.constant 0 : index
    %6 = vector.load %arg4[%c0_5, %c0_6] : memref<4x128xbf16, #tpu.memory_space<vmem>>, vector<4x128xbf16>
    %cst_7 = arith.constant dense<0.000000e+00> : vector<8x128xf32>
    %7 = tpu.matmul %5, %6, %cst_7 {dimension_numbers = #tpu.dot_dimension_numbers<[1], [0], [0], [1], [0, 0, 1, 1], [], []>} : vector<8x4xbf16>, vector<4x128xbf16>, vector<8x128xf32> -> vector<8x128xf32>
    %8 = arith.addf %3, %7 : vector<8x128xf32>
    %c0_8 = arith.constant 0 : index
    %c0_9 = arith.constant 0 : index
    %9 = vector.load %arg5[%c0_8, %c0_9] : memref<1x128xf32, #tpu.memory_space<vmem>>, vector<1x128xf32>
    %10 = vector.broadcast %9 : vector<1x128xf32> to vector<8x128xf32>
    %11 = arith.addf %8, %10 : vector<8x128xf32>
    %cst_10 = arith.constant 0.000000e+00 : f32
    %12 = vector.broadcast %cst_10 : f32 to vector<8x128xf32>
    %13 = arith.maximumf %11, %12 : vector<8x128xf32>
    %14 = arith.truncf %13 : vector<8x128xf32> to vector<8x128xbf16>
    %c0_11 = arith.constant 0 : index
    %c0_12 = arith.constant 0 : index
    %15 = vector.load %arg6[%c0_11, %c0_12] : memref<128x128xbf16, #tpu.memory_space<vmem>>, vector<128x128xbf16>
    %cst_13 = arith.constant dense<0.000000e+00> : vector<8x128xf32>
    %16 = tpu.matmul %14, %15, %cst_13 {dimension_numbers = #tpu.dot_dimension_numbers<[1], [0], [0], [1], [0, 0, 1, 1], [], []>} : vector<8x128xbf16>, vector<128x128xbf16>, vector<8x128xf32> -> vector<8x128xf32>
    %c0_14 = arith.constant 0 : index
    %c0_15 = arith.constant 0 : index
    %17 = vector.load %arg7[%c0_14, %c0_15] : memref<1x128xf32, #tpu.memory_space<vmem>>, vector<1x128xf32>
    %18 = vector.broadcast %17 : vector<1x128xf32> to vector<8x128xf32>
    %19 = arith.addf %16, %18 : vector<8x128xf32>
    %cst_16 = arith.constant 0.000000e+00 : f32
    %20 = vector.broadcast %cst_16 : f32 to vector<8x128xf32>
    %21 = arith.maximumf %19, %20 : vector<8x128xf32>
    %22 = arith.truncf %21 : vector<8x128xf32> to vector<8x128xbf16>
    %c0_17 = arith.constant 0 : index
    %c0_18 = arith.constant 0 : index
    %23 = vector.load %arg8[%c0_17, %c0_18] : memref<128x128xbf16, #tpu.memory_space<vmem>>, vector<128x128xbf16>
    %cst_19 = arith.constant dense<0.000000e+00> : vector<8x128xf32>
    %24 = tpu.matmul %22, %23, %cst_19 {dimension_numbers = #tpu.dot_dimension_numbers<[1], [0], [0], [1], [0, 0, 1, 1], [], []>} : vector<8x128xbf16>, vector<128x128xbf16>, vector<8x128xf32> -> vector<8x128xf32>
    %c0_20 = arith.constant 0 : index
    %c0_21 = arith.constant 0 : index
    %25 = vector.load %arg9[%c0_20, %c0_21] : memref<8x128xf32, #tpu.memory_space<vmem>>, vector<8x128xf32>
    tpu.vector_store %arg9[%c0_20, %c0_21], %24 {strides = array<i32>} : memref<8x128xf32, #tpu.memory_space<vmem>>, vector<8x128xf32>,
    return
  }
  func.func @transform_0(%arg0: i32) -> (i32, i32) {
    %c0_i32 = arith.constant 0 : i32
    %c0_i32_0 = arith.constant 0 : i32
    return %arg0, %c0_i32 : i32, i32
  }
  func.func @transform_1(%arg0: i32) -> (i32, i32) {
    %c0_i32 = arith.constant 0 : i32
    %c0_i32_0 = arith.constant 0 : i32
    return %arg0, %c0_i32 : i32, i32
  }
  func.func @transform_2(%arg0: i32) -> (i32, i32) {
    %c0_i32 = arith.constant 0 : i32
    %c0_i32_0 = arith.constant 0 : i32
    %c0_i32_1 = arith.constant 0 : i32
    return %c0_i32, %c0_i32_0 : i32, i32
  }
  func.func @transform_3(%arg0: i32) -> (i32, i32) {
    %c0_i32 = arith.constant 0 : i32
    %c0_i32_0 = arith.constant 0 : i32
    %c0_i32_1 = arith.constant 0 : i32
    return %c0_i32, %c0_i32_0 : i32, i32
  }
  func.func @transform_4(%arg0: i32) -> (i32, i32) {
    %c0_i32 = arith.constant 0 : i32
    %c0_i32_0 = arith.constant 0 : i32
    %c0_i32_1 = arith.constant 0 : i32
    return %c0_i32, %c0_i32_0 : i32, i32
  }
  func.func @transform_5(%arg0: i32) -> (i32, i32) {
    %c0_i32 = arith.constant 0 : i32
    %c0_i32_0 = arith.constant 0 : i32
    %c0_i32_1 = arith.constant 0 : i32
    return %c0_i32, %c0_i32_0 : i32, i32
  }
  func.func @transform_6(%arg0: i32) -> (i32, i32) {
    %c0_i32 = arith.constant 0 : i32
    %c0_i32_0 = arith.constant 0 : i32
    %c0_i32_1 = arith.constant 0 : i32
    return %c0_i32, %c0_i32_0 : i32, i32
  }
  func.func @transform_7(%arg0: i32) -> (i32, i32) {
    %c0_i32 = arith.constant 0 : i32
    %c0_i32_0 = arith.constant 0 : i32
    %c0_i32_1 = arith.constant 0 : i32
    return %c0_i32, %c0_i32_0 : i32, i32
  }
  func.func @transform_8(%arg0: i32) -> (i32, i32) {
    %c0_i32 = arith.constant 0 : i32
    %c0_i32_0 = arith.constant 0 : i32
    return %arg0, %c0_i32 : i32, i32
  }
}

module attributes {stable_mosaic.version = 11 : i64} {
  func.func @kernel(%arg0: i32, %arg1: memref<8x32xf32, #tpu.memory_space<vmem>>, %arg2: memref<8x4xf32, #tpu.memory_space<vmem>>, %arg3: memref<32x128xbf16, #tpu.memory_space<vmem>>, %arg4: memref<4x128xbf16, #tpu.memory_space<vmem>>, %arg5: memref<1x128xf32, #tpu.memory_space<vmem>>, %arg6: memref<128x128xbf16, #tpu.memory_space<vmem>>, %arg7: memref<1x128xf32, #tpu.memory_space<vmem>>, %arg8: memref<128x128xbf16, #tpu.memory_space<vmem>>, %arg9: memref<8x128xf32, #tpu.memory_space<vmem>>) attributes {dimension_semantics = [#tpu.dimension_semantics<parallel>], iteration_bounds = array<i64: 1>, scalar_prefetch = 0 : i64, scratch_operands = 0 : i64, tpu.core_type = #tpu.core_type<tc>, window_params = [{transform_indices = @transform_0, window_bounds = array<i64: 8, 32>}, {transform_indices = @transform_1, window_bounds = array<i64: 8, 4>}, {pipeline_mode = #tpu.pipeline_mode<synchronous>, transform_indices = @transform_2, window_bounds = array<i64: 32, 128>}, {pipeline_mode = #tpu.pipeline_mode<synchronous>, transform_indices = @transform_3, window_bounds = array<i64: 4, 128>}, {pipeline_mode = #tpu.pipeline_mode<synchronous>, transform_indices = @transform_4, window_bounds = array<i64: 1, 128>}, {pipeline_mode = #tpu.pipeline_mode<synchronous>, transform_indices = @transform_5, window_bounds = array<i64: 128, 128>}, {pipeline_mode = #tpu.pipeline_mode<synchronous>, transform_indices = @transform_6, window_bounds = array<i64: 1, 128>}, {pipeline_mode = #tpu.pipeline_mode<synchronous>, transform_indices = @transform_7, window_bounds = array<i64: 128, 128>}, {transform_indices = @transform_8, window_bounds = array<i64: 8, 128>}]} {
    %c0 = arith.constant 0 : index
    %c0_0 = arith.constant 0 : index
    %0 = vector.load %arg1[%c0, %c0_0] : memref<8x32xf32, #tpu.memory_space<vmem>>, vector<8x32xf32>
    %1 = arith.truncf %0 : vector<8x32xf32> to vector<8x32xbf16>
    %c0_1 = arith.constant 0 : index
    %c0_2 = arith.constant 0 : index
    %2 = vector.load %arg3[%c0_1, %c0_2] : memref<32x128xbf16, #tpu.memory_space<vmem>>, vector<32x128xbf16>
    %cst = arith.constant dense<0.000000e+00> : vector<8x128xf32>
    %3 = tpu.matmul %1, %2, %cst {dimension_numbers = #tpu.dot_dimension_numbers<[1], [0], [0], [1], [0, 0, 1, 1], [], []>} : vector<8x32xbf16>, vector<32x128xbf16>, vector<8x128xf32> -> vector<8x128xf32>
    %c0_3 = arith.constant 0 : index
    %c0_4 = arith.constant 0 : index
    %4 = vector.load %arg2[%c0_3, %c0_4] : memref<8x4xf32, #tpu.memory_space<vmem>>, vector<8x4xf32>
    %5 = arith.truncf %4 : vector<8x4xf32> to vector<8x4xbf16>
    %c0_5 = arith.constant 0 : index
    %c0_6 = arith.constant 0 : index
    %6 = vector.load %arg4[%c0_5, %c0_6] : memref<4x128xbf16, #tpu.memory_space<vmem>>, vector<4x128xbf16>
    %cst_7 = arith.constant dense<0.000000e+00> : vector<8x128xf32>
    %7 = tpu.matmul %5, %6, %cst_7 {dimension_numbers = #tpu.dot_dimension_numbers<[1], [0], [0], [1], [0, 0, 1, 1], [], []>} : vector<8x4xbf16>, vector<4x128xbf16>, vector<8x128xf32> -> vector<8x128xf32>
    %8 = arith.addf %3, %7 : vector<8x128xf32>
    %c0_8 = arith.constant 0 : index
    %c0_9 = arith.constant 0 : index
    %9 = vector.load %arg5[%c0_8, %c0_9] : memref<1x128xf32, #tpu.memory_space<vmem>>, vector<1x128xf32>
    %10 = vector.broadcast %9 : vector<1x128xf32> to vector<8x128xf32>
    %11 = arith.addf %8, %10 : vector<8x128xf32>
    %cst_10 = arith.constant 0.000000e+00 : f32
    %12 = vector.broadcast %cst_10 : f32 to vector<8x128xf32>
    %13 = arith.maximumf %11, %12 : vector<8x128xf32>
    %14 = arith.truncf %13 : vector<8x128xf32> to vector<8x128xbf16>
    %c0_11 = arith.constant 0 : index
    %c0_12 = arith.constant 0 : index
    %15 = vector.load %arg6[%c0_11, %c0_12] : memref<128x128xbf16, #tpu.memory_space<vmem>>, vector<128x128xbf16>
    %cst_13 = arith.constant dense<0.000000e+00> : vector<8x128xf32>
    %16 = tpu.matmul %14, %15, %cst_13 {dimension_numbers = #tpu.dot_dimension_numbers<[1], [0], [0], [1], [0, 0, 1, 1], [], []>} : vector<8x128xbf16>, vector<128x128xbf16>, vector<8x128xf32> -> vector<8x128xf32>
    %c0_14 = arith.constant 0 : index
    %c0_15 = arith.constant 0 : index
    %17 = vector.load %arg7[%c0_14, %c0_15] : memref<1x128xf32, #tpu.memory_space<vmem>>, vector<1x128xf32>
    %18 = vector.broadcast %17 : vector<1x128xf32> to vector<8x128xf32>
    %19 = arith.addf %16, %18 : vector<8x128xf32>
    %cst_16 = arith.constant 0.000000e+00 : f32
    %20 = vector.broadcast %cst_16 : f32 to vector<8x128xf32>
    %21 = arith.maximumf %19, %20 : vector<8x128xf32>
    %22 = arith.truncf %21 : vector<8x128xf32> to vector<8x128xbf16>
    %c0_17 = arith.constant 0 : index
    %c0_18 = arith.constant 0 : index
    %23 = vector.load %arg8[%c0_17, %c0_18] : memref<128x128xbf16, #tpu.memory_space<vmem>>, vector<128x128xbf16>
    %cst_19 = arith.constant dense<0.000000e+00> : vector<8x128xf32>
    %24 = tpu.matmul %22, %23, %cst_19 {dimension_numbers = #tpu.dot_dimension_numbers<[1], [0], [0], [1], [0, 0, 1, 1], [], []>} : vector<8x128xbf16>, vector<128x128xbf16>, vector<8x128xf32> -> vector<8x128xf32>
    %c0_20 = arith.constant 0 : index
    %c0_21 = arith.constant 0 : index
    %25 = vector.load %arg9[%c0_20, %c0_21] : memref<8x128xf32, #tpu.memory_space<vmem>>, vector<8x128xf32>
    tpu.vector_store %arg9[%c0_20, %c0_21], %24 {strides = array<i32>} : memref<8x128xf32, #tpu.memory_space<vmem>>, vector<8x128xf32>,
    return
  }
  func.func @transform_0(%arg0: i32) -> (i32, i32) {
    %c0_i32 = arith.constant 0 : i32
    %c0_i32_0 = arith.constant 0 : i32
    return %arg0, %c0_i32 : i32, i32
  }
  func.func @transform_1(%arg0: i32) -> (i32, i32) {
    %c0_i32 = arith.constant 0 : i32
    %c0_i32_0 = arith.constant 0 : i32
    return %arg0, %c0_i32 : i32, i32
  }
  func.func @transform_2(%arg0: i32) -> (i32, i32) {
    %c0_i32 = arith.constant 0 : i32
    %c0_i32_0 = arith.constant 0 : i32
    %c0_i32_1 = arith.constant 0 : i32
    return %c0_i32, %c0_i32_0 : i32, i32
  }
  func.func @transform_3(%arg0: i32) -> (i32, i32) {
    %c0_i32 = arith.constant 0 : i32
    %c0_i32_0 = arith.constant 0 : i32
    %c0_i32_1 = arith.constant 0 : i32
    return %c0_i32, %c0_i32_0 : i32, i32
  }
  func.func @transform_4(%arg0: i32) -> (i32, i32) {
    %c0_i32 = arith.constant 0 : i32
    %c0_i32_0 = arith.constant 0 : i32
    %c0_i32_1 = arith.constant 0 : i32
    return %c0_i32, %c0_i32_0 : i32, i32
  }
  func.func @transform_5(%arg0: i32) -> (i32, i32) {
    %c0_i32 = arith.constant 0 : i32
    %c0_i32_0 = arith.constant 0 : i32
    %c0_i32_1 = arith.constant 0 : i32
    return %c0_i32, %c0_i32_0 : i32, i32
  }
  func.func @transform_6(%arg0: i32) -> (i32, i32) {
    %c0_i32 = arith.constant 0 : i32
    %c0_i32_0 = arith.constant 0 : i32
    %c0_i32_1 = arith.constant 0 : i32
    return %c0_i32, %c0_i32_0 : i32, i32
  }
  func.func @transform_7(%arg0: i32) -> (i32, i32) {
    %c0_i32 = arith.constant 0 : i32
    %c0_i32_0 = arith.constant 0 : i32
    %c0_i32_1 = arith.constant 0 : i32
    return %c0_i32, %c0_i32_0 : i32, i32
  }
  func.func @transform_8(%arg0: i32) -> (i32, i32) {
    %c0_i32 = arith.constant 0 : i32
    %c0_i32_0 = arith.constant 0 : i32
    return %arg0, %c0_i32 : i32, i32
  }
}

</mosaic_0001>

<llo_original>
// kernel: tpu_custom_call.1
$region0: #{tpu_custom_call.1}
  #allocation0 [shape = 'u32[]', space=smem, size = 0x4, offset = 0x4, fixed_abs, tag = 'smem constant byte address 0x4 - core index']
  #allocation1 [shape = 'u32[144,128]{1,0:T(1,128)}', space=vmem, size = 0x12000, scoped, tag = 'internal scratch']
  %s0 = inlined_call_operand.hbm [shape: f32[8,32], index: 0, kind: input, shape index: {}]
  %s1 = inlined_call_operand.vmem [shape: f32[8,4], index: 1, kind: input, shape index: {}]
  %s2 = inlined_call_operand.vmem [shape: bf16[32,128], index: 2, kind: input, shape index: {}]
  %s3 = inlined_call_operand.vmem [shape: bf16[4,128], index: 3, kind: input, shape index: {}]
  %s4 = inlined_call_operand.vmem [shape: f32[1,128], index: 4, kind: input, shape index: {}]
  %s5 = inlined_call_operand.hbm [shape: bf16[128,128], index: 5, kind: input, shape index: {}]
  %s6 = inlined_call_operand.vmem [shape: f32[1,128], index: 6, kind: input, shape index: {}]
  %s7 = inlined_call_operand.hbm [shape: bf16[128,128], index: 7, kind: input, shape index: {}]
  %s8 = inlined_call_operand.hbm [shape: f32[8,128], index: 8, kind: output, shape index: {}]
  %s9 = sld [smem:[#allocation0]]
  $region54: #{tpu_custom_call.1} parent=0
    _
  %s11 = ssub.s32 1, %s9
  %s12 = scalar_select 0, %s11, %s9
  $region1: #{tpu_custom_call.1} parent=0
    #allocation2 [shape = 'u8[4096]{0}', space=vmem, size = 0x1000, scoped, tag = 'input window, operand 0, single buffered']
    #allocation3 [shape = 's32[1]{0}', space=sflag, size = 0x4, scoped, tag = 'scoped memory for tpu_custom_call.1']
    #allocation4 [shape = 's32[1]{0}', space=sflag, size = 0x4, scoped, tag = 'scoped memory for tpu_custom_call.1']
    #allocation5 [shape = 'u8[32768]{0}', space=vmem, size = 0x8000, scoped, tag = 'input window, operand 5, single buffered']
    #allocation6 [shape = 's32[1]{0}', space=sflag, size = 0x4, scoped, tag = 'scoped memory for tpu_custom_call.1']
    #allocation7 [shape = 'u8[32768]{0}', space=vmem, size = 0x8000, scoped, tag = 'input window, operand 7, single buffered']
    #allocation8 [shape = 'u8[4096]{0}', space=vmem, size = 0x1000, scoped, tag = 'output window, operand 0, single buffered']
    %13 = vsyncpa [#allocation3], 0
    %14 = vsyncpa [#allocation6], 0
    %15 = vsyncpa [#allocation4], 0
    // Predicated region
    $region2: #{tpu_custom_call.1} parent=1 // pred_check
      _
    $region3: #{tpu_custom_call.1} parent=1 // pred_check_branch
      %17 = sbr.rel (0) target = $region5
    $region4: #{tpu_custom_call.1} parent=1 // pred_region
      %s19 = ssub.s32 128, 128
      %20 = vsyncadd [#allocation3], %s19
      %s22 = sshll.u32 [#allocation2], 4
      %s23 = int_to_ptr.vmem [resolvable:$true] %s22
      %25 = dma.hbm_to_vmem [thread:$0]  %s0, 128, %s23, [#allocation3]
    $region5: #{tpu_custom_call.1} parent=1 // pred_fallthru
      _
    // Predicated region
    $region6: #{tpu_custom_call.1} parent=1 // pred_check
      _
    $region7: #{tpu_custom_call.1} parent=1 // pred_check_branch
      %27 = sbr.rel (0) target = $region9
    $region8: #{tpu_custom_call.1} parent=1 // pred_region
      _
    $region9: #{tpu_custom_call.1} parent=1 // pred_fallthru
      _
    // Predicated region
    $region10: #{tpu_custom_call.1} parent=1 // pred_check
      _
    $region11: #{tpu_custom_call.1} parent=1 // pred_check_branch
      %29 = sbr.rel (0) target = $region13
    $region12: #{tpu_custom_call.1} parent=1 // pred_region
      _
    $region13: #{tpu_custom_call.1} parent=1 // pred_fallthru
      _
    // Predicated region
    $region14: #{tpu_custom_call.1} parent=1 // pred_check
      _
    $region15: #{tpu_custom_call.1} parent=1 // pred_check_branch
      %31 = sbr.rel (0) target = $region17
    $region16: #{tpu_custom_call.1} parent=1 // pred_region
      _
    $region17: #{tpu_custom_call.1} parent=1 // pred_fallthru
      _
    // Predicated region
    $region18: #{tpu_custom_call.1} parent=1 // pred_check
      _
    $region19: #{tpu_custom_call.1} parent=1 // pred_check_branch
      %33 = sbr.rel (0) target = $region21
    $region20: #{tpu_custom_call.1} parent=1 // pred_region
      _
    $region21: #{tpu_custom_call.1} parent=1 // pred_fallthru
      _
    // Predicated region
    $region22: #{tpu_custom_call.1} parent=1 // pred_check
      _
    $region23: #{tpu_custom_call.1} parent=1 // pred_check_branch
      %35 = sbr.rel (0) target = $region25
    $region24: #{tpu_custom_call.1} parent=1 // pred_region
      %s37 = ssub.s32 1024, 1024
      %38 = vsyncadd [#allocation6], %s37
      %s39 = sshll.u32 [#allocation5], 4
      %s40 = int_to_ptr.vmem [resolvable:$true] %s39
      %45 = dma.hbm_to_vmem [thread:$0]  %s5, 1024, %s40, [#allocation6], 64, 64, 4
    $region25: #{tpu_custom_call.1} parent=1 // pred_fallthru
      _
    // Predicated region
    $region26: #{tpu_custom_call.1} parent=1 // pred_check
      _
    $region27: #{tpu_custom_call.1} parent=1 // pred_check_branch
      %47 = sbr.rel (0) target = $region29
    $region28: #{tpu_custom_call.1} parent=1 // pred_region
      _
    $region29: #{tpu_custom_call.1} parent=1 // pred_fallthru
      _
    // Predicated region
    $region30: #{tpu_custom_call.1} parent=1 // pred_check
      _
    $region31: #{tpu_custom_call.1} parent=1 // pred_check_branch
      %49 = sbr.rel (0) target = $region33
    $region32: #{tpu_custom_call.1} parent=1 // pred_region
      %s51 = ssub.s32 1024, 1024
      %52 = vsyncadd [#allocation6], %s51
      %s53 = sshll.u32 [#allocation7], 4
      %s54 = int_to_ptr.vmem [resolvable:$true] %s53
      %59 = dma.hbm_to_vmem [thread:$0]  %s7, 1024, %s54, [#allocation6], 64, 64, 4
    $region33: #{tpu_custom_call.1} parent=1 // pred_fallthru
      _
    // Predicated region
    $region34: #{tpu_custom_call.1} parent=1 // pred_check
      _
    $region35: #{tpu_custom_call.1} parent=1 // pred_check_branch
      %61 = sbr.rel (0) target = $region37
    $region36: #{tpu_custom_call.1} parent=1 // pred_region
      %62 = dma.done [#allocation3], 128
    $region37: #{tpu_custom_call.1} parent=1 // pred_fallthru
      _
    // Predicated region
    $region38: #{tpu_custom_call.1} parent=1 // pred_check
      _
    $region39: #{tpu_custom_call.1} parent=1 // pred_check_branch
      %64 = sbr.rel (0) target = $region41
    $region40: #{tpu_custom_call.1} parent=1 // pred_region
      %65 = dma.done [#allocation6], 1024
    $region41: #{tpu_custom_call.1} parent=1 // pred_fallthru
      _
    // Predicated region
    $region42: #{tpu_custom_call.1} parent=1 // pred_check
      _
    $region43: #{tpu_custom_call.1} parent=1 // pred_check_branch
      %67 = sbr.rel (0) target = $region45
    $region44: #{tpu_custom_call.1} parent=1 // pred_region
      %68 = dma.done [#allocation6], 1024
    $region45: #{tpu_custom_call.1} parent=1 // pred_fallthru
      _
    %v70 = vld [vmem:[#allocation2] sm:$0xff]
    %v71 = vpack.c.bf16 %v70, %v70
    %v72 = vld [vmem:[%s2] sm:$0xf]
    %v73 = vld [vmem:[%s2 + $0x4] sm:$0xf]
    %v74 = vld [vmem:[%s2 + $0x8] sm:$0xf]
    %v75 = vld [vmem:[%s2 + $0xc] sm:$0xf]
    %v76 = vld [vmem:[%s1] sm:$0xff]
    %v77 = vpack.c.bf16 %v76, %v76
    %v78 = vld [vmem:[%s3] sm:$0x3]
    %vm79 = vcmask 31744
    %v81 = vsel %vm79, %v77, 0
    %vm83 = vcmask 1041408
    %v85 = vsel %vm83, %v78, 0
    %87 = vmatprep.subr.bf16.mxu0 0
    %88 = vmatpush1.bf16.msra.mxu0 %v85
    %89 = vmatprep.subr.bf16.mxu0 0
    %90 = vmatpush1.bf16.msra.mxu0 0
    %91 = vmatprep.subr.bf16.mxu0 0
    %92 = vmatpush1.bf16.msra.mxu0 0
    %93 = vmatprep.subr.bf16.mxu0 0
    %94 = vmatpush1.bf16.msra.mxu0 0
    %95 = vmatprep.subr.bf16.mxu0 0
    %96 = vmatpush1.bf16.msra.mxu0 0
    %97 = vmatprep.subr.bf16.mxu0 0
    %98 = vmatpush1.bf16.msra.mxu0 0
    %99 = vmatprep.subr.bf16.mxu0 0
    %100 = vmatpush1.bf16.msra.mxu0 0
    %101 = vmatprep.subr.bf16.mxu0 0
    %102 = vmatpush1.bf16.msra.mxu0 0
    %103 = vmatprep.subr.bf16.mxu0 0
    %104 = vmatpush1.bf16.msra.mxu0 0
    %105 = vmatprep.subr.bf16.mxu0 0
    %106 = vmatpush1.bf16.msra.mxu0 0
    %107 = vmatprep.subr.bf16.mxu0 0
    %108 = vmatpush1.bf16.msra.mxu0 0
    %109 = vmatprep.subr.bf16.mxu0 0
    %110 = vmatpush1.bf16.msra.mxu0 0
    %111 = vmatprep.subr.bf16.mxu0 0
    %112 = vmatpush1.bf16.msra.mxu0 0
    %113 = vmatprep.subr.bf16.mxu0 0
    %114 = vmatpush1.bf16.msra.mxu0 0
    %115 = vmatprep.subr.bf16.mxu0 0
    %116 = vmatpush1.bf16.msra.mxu0 0
    %117 = vmatprep.subr.bf16.mxu0 0
    %118 = vmatpush1.bf16.msra.mxu0 0
    %119 = vmatprep.mubr.bf16.mxu0 0
    %120 = vmatmul.mubr.bf16.gmra.mrb[0].mxu0 %v81
    %v121 = vpop.f32.mrb[0].mxu0
    %v122 = vadd.f32 0.0, %v121
    %v123 = vpop.f32.mrb[0].mxu0
    %v124 = vpop.f32.mrb[0].mxu0
    %v125 = vpop.f32.mrb[0].mxu0
    %126 = vdwg.mxu0
    %v131 = vunpack.c.l.b16 %v72
    %v132 = vunpack.c.l.b16 %v73
    %v133 = vunpack.c.l.b16 %v74
    %v134 = vunpack.c.l.b16 %v75
    %v135 = vpack.c.b16 %v132, %v131
    %v136 = vpack.c.b16 %v134, %v133
    %vm139 = vcmask 261120
    %v141 = vsel %vm139, %v71, 0
    %143 = vmatprep.subr.bf16.mxu0 0
    %144 = vmatpush1.bf16.msra.mxu0 %v135
    %145 = vmatprep.subr.bf16.mxu0 0
    %146 = vmatpush1.bf16.msra.mxu0 %v136
    %147 = vmatprep.subr.bf16.mxu0 0
    %148 = vmatpush1.bf16.msra.mxu0 0
    %149 = vmatprep.subr.bf16.mxu0 0
    %150 = vmatpush1.bf16.msra.mxu0 0
    %151 = vmatprep.subr.bf16.mxu0 0
    %152 = vmatpush1.bf16.msra.mxu0 0
    %153 = vmatprep.subr.bf16.mxu0 0
    %154 = vmatpush1.bf16.msra.mxu0 0
    %155 = vmatprep.subr.bf16.mxu0 0
    %156 = vmatpush1.bf16.msra.mxu0 0
    %157 = vmatprep.subr.bf16.mxu0 0
    %158 = vmatpush1.bf16.msra.mxu0 0
    %159 = vmatprep.subr.bf16.mxu0 0
    %160 = vmatpush1.bf16.msra.mxu0 0
    %161 = vmatprep.subr.bf16.mxu0 0
    %162 = vmatpush1.bf16.msra.mxu0 0
    %163 = vmatprep.subr.bf16.mxu0 0
    %164 = vmatpush1.bf16.msra.mxu0 0
    %165 = vmatprep.subr.bf16.mxu0 0
    %166 = vmatpush1.bf16.msra.mxu0 0
    %167 = vmatprep.subr.bf16.mxu0 0
    %168 = vmatpush1.bf16.msra.mxu0 0
    %169 = vmatprep.subr.bf16.mxu0 0
    %170 = vmatpush1.bf16.msra.mxu0 0
    %171 = vmatprep.subr.bf16.mxu0 0
    %172 = vmatpush1.bf16.msra.mxu0 0
    %173 = vmatprep.subr.bf16.mxu0 0
    %174 = vmatpush1.bf16.msra.mxu0 0
    %175 = vmatprep.mubr.bf16.mxu0 0
    %176 = vmatmul.mubr.bf16.gmra.mrb[0].mxu0 %v141
    %v177 = vpop.f32.mrb[0].mxu0
    %v178 = vadd.f32 %v122, %v177
    %v179 = vpop.f32.mrb[0].mxu0
    %v180 = vpop.f32.mrb[0].mxu0
    %v181 = vpop.f32.mrb[0].mxu0
    %182 = vdwg.mxu0
    %v183 = vld [vmem:[%s4] sm:$0x1]
    %v185 = vlaneseq
    %v186 = vshrl.u32 %v185, 7
    %v187 = vsub.s32 0, %v186
    %v188 = vrot.slane %v183, %v187
    %v190 = vadd.f32 %v178, %v188
    %v191 = vmax.f32 %v190, 0.0
    %v192 = vpack.c.bf16 %v191, %v191
    %v193 = vld [vmem:[#allocation5] sm:$0xf]
    %v194 = vld [vmem:[#allocation5 + $0x4] sm:$0xf]
    %v195 = vld [vmem:[#allocation5 + $0x8] sm:$0xf]
    %v196 = vld [vmem:[#allocation5 + $0xc] sm:$0xf]
    %v197 = vld [vmem:[#allocation5 + $0x10] sm:$0xf]
    %v198 = vld [vmem:[#allocation5 + $0x14] sm:$0xf]
    %v199 = vld [vmem:[#allocation5 + $0x18] sm:$0xf]
    %v200 = vld [vmem:[#allocation5 + $0x1c] sm:$0xf]
    %v201 = vld [vmem:[#allocation5 + $0x20] sm:$0xf]
    %v202 = vld [vmem:[#allocation5 + $0x24] sm:$0xf]
    %v203 = vld [vmem:[#allocation5 + $0x28] sm:$0xf]
    %v204 = vld [vmem:[#allocation5 + $0x2c] sm:$0xf]
    %v205 = vld [vmem:[#allocation5 + $0x30] sm:$0xf]
    %v206 = vld [vmem:[#allocation5 + $0x34] sm:$0xf]
    %v207 = vld [vmem:[#allocation5 + $0x38] sm:$0xf]
    %v208 = vld [vmem:[#allocation5 + $0x3c] sm:$0xf]
    %v209 = vld [vmem:[%s6] sm:$0x1]
    %v211 = vlaneseq
    %v212 = vshrl.u32 %v211, 7
    %v213 = vsub.s32 0, %v212
    %v214 = vrot.slane %v209, %v213
    %v232 = vunpack.c.l.b16 %v193
    %v233 = vunpack.c.l.b16 %v194
    %v234 = vunpack.c.l.b16 %v195
    %v235 = vunpack.c.l.b16 %v196
    %v236 = vunpack.c.l.b16 %v197
    %v237 = vunpack.c.l.b16 %v198
    %v238 = vunpack.c.l.b16 %v199
    %v239 = vunpack.c.l.b16 %v200
    %v240 = vunpack.c.l.b16 %v201
    %v241 = vunpack.c.l.b16 %v202
    %v242 = vunpack.c.l.b16 %v203
    %v243 = vunpack.c.l.b16 %v204
    %v244 = vunpack.c.l.b16 %v205
    %v245 = vunpack.c.l.b16 %v206
    %v246 = vunpack.c.l.b16 %v207
    %v247 = vunpack.c.l.b16 %v208
    %v248 = vpack.c.b16 %v233, %v232
    %v249 = vpack.c.b16 %v235, %v234
    %v250 = vpack.c.b16 %v237, %v236
    %v251 = vpack.c.b16 %v239, %v238
    %v252 = vpack.c.b16 %v241, %v240
    %v253 = vpack.c.b16 %v243, %v242
    %v254 = vpack.c.b16 %v245, %v244
    %v255 = vpack.c.b16 %v247, %v246
    %264 = vmatprep.subr.bf16.mxu0 0
    %265 = vmatpush1.bf16.msra.mxu0 %v248
    %266 = vmatprep.subr.bf16.mxu0 0
    %267 = vmatpush1.bf16.msra.mxu0 %v249
    %268 = vmatprep.subr.bf16.mxu0 0
    %269 = vmatpush1.bf16.msra.mxu0 %v250
    %270 = vmatprep.subr.bf16.mxu0 0
    %271 = vmatpush1.bf16.msra.mxu0 %v251
    %272 = vmatprep.subr.bf16.mxu0 0
    %273 = vmatpush1.bf16.msra.mxu0 %v252
    %274 = vmatprep.subr.bf16.mxu0 0
    %275 = vmatpush1.bf16.msra.mxu0 %v253
    %276 = vmatprep.subr.bf16.mxu0 0
    %277 = vmatpush1.bf16.msra.mxu0 %v254
    %278 = vmatprep.subr.bf16.mxu0 0
    %279 = vmatpush1.bf16.msra.mxu0 %v255
    %280 = vmatprep.subr.bf16.mxu0 0
    %281 = vmatpush1.bf16.msra.mxu0 0
    %282 = vmatprep.subr.bf16.mxu0 0
    %283 = vmatpush1.bf16.msra.mxu0 0
    %284 = vmatprep.subr.bf16.mxu0 0
    %285 = vmatpush1.bf16.msra.mxu0 0
    %286 = vmatprep.subr.bf16.mxu0 0
    %287 = vmatpush1.bf16.msra.mxu0 0
    %288 = vmatprep.subr.bf16.mxu0 0
    %289 = vmatpush1.bf16.msra.mxu0 0
    %290 = vmatprep.subr.bf16.mxu0 0
    %291 = vmatpush1.bf16.msra.mxu0 0
    %292 = vmatprep.subr.bf16.mxu0 0
    %293 = vmatpush1.bf16.msra.mxu0 0
    %294 = vmatprep.subr.bf16.mxu0 0
    %295 = vmatpush1.bf16.msra.mxu0 0
    %296 = vmatprep.mubr.bf16.mxu0 0
    %297 = vmatmul.mubr.bf16.gmra.mrb[0].mxu0 %v192
    %v298 = vpop.f32.mrb[0].mxu0
    %v299 = vadd.f32 %v214, %v298
    %v300 = vpop.f32.mrb[0].mxu0
    %v301 = vpop.f32.mrb[0].mxu0
    %v302 = vpop.f32.mrb[0].mxu0
    %303 = vdwg.mxu0
    %v304 = vmax.f32 %v299, 0.0
    %v305 = vpack.c.bf16 %v304, %v304
    %v306 = vld [vmem:[#allocation7] sm:$0xf]
    %v307 = vld [vmem:[#allocation7 + $0x4] sm:$0xf]
    %v308 = vld [vmem:[#allocation7 + $0x8] sm:$0xf]
    %v309 = vld [vmem:[#allocation7 + $0xc] sm:$0xf]
    %v310 = vld [vmem:[#allocation7 + $0x10] sm:$0xf]
    %v311 = vld [vmem:[#allocation7 + $0x14] sm:$0xf]
    %v312 = vld [vmem:[#allocation7 + $0x18] sm:$0xf]
    %v313 = vld [vmem:[#allocation7 + $0x1c] sm:$0xf]
    %v314 = vld [vmem:[#allocation7 + $0x20] sm:$0xf]
    %v315 = vld [vmem:[#allocation7 + $0x24] sm:$0xf]
    %v316 = vld [vmem:[#allocation7 + $0x28] sm:$0xf]
    %v317 = vld [vmem:[#allocation7 + $0x2c] sm:$0xf]
    %v318 = vld [vmem:[#allocation7 + $0x30] sm:$0xf]
    %v319 = vld [vmem:[#allocation7 + $0x34] sm:$0xf]
    %v320 = vld [vmem:[#allocation7 + $0x38] sm:$0xf]
    %v321 = vld [vmem:[#allocation7 + $0x3c] sm:$0xf]
    %v338 = vunpack.c.l.b16 %v306
    %v339 = vunpack.c.l.b16 %v307
    %v340 = vunpack.c.l.b16 %v308
    %v341 = vunpack.c.l.b16 %v309
    %v342 = vunpack.c.l.b16 %v310
    %v343 = vunpack.c.l.b16 %v311
    %v344 = vunpack.c.l.b16 %v312
    %v345 = vunpack.c.l.b16 %v313
    %v346 = vunpack.c.l.b16 %v314
    %v347 = vunpack.c.l.b16 %v315
    %v348 = vunpack.c.l.b16 %v316
    %v349 = vunpack.c.l.b16 %v317
    %v350 = vunpack.c.l.b16 %v318
    %v351 = vunpack.c.l.b16 %v319
    %v352 = vunpack.c.l.b16 %v320
    %v353 = vunpack.c.l.b16 %v321
    %v354 = vpack.c.b16 %v339, %v338
    %v355 = vpack.c.b16 %v341, %v340
    %v356 = vpack.c.b16 %v343, %v342
    %v357 = vpack.c.b16 %v345, %v344
    %v358 = vpack.c.b16 %v347, %v346
    %v359 = vpack.c.b16 %v349, %v348
    %v360 = vpack.c.b16 %v351, %v350
    %v361 = vpack.c.b16 %v353, %v352
    %370 = vmatprep.subr.bf16.mxu0 0
    %371 = vmatpush1.bf16.msra.mxu0 %v354
    %372 = vmatprep.subr.bf16.mxu0 0
    %373 = vmatpush1.bf16.msra.mxu0 %v355
    %374 = vmatprep.subr.bf16.mxu0 0
    %375 = vmatpush1.bf16.msra.mxu0 %v356
    %376 = vmatprep.subr.bf16.mxu0 0
    %377 = vmatpush1.bf16.msra.mxu0 %v357
    %378 = vmatprep.subr.bf16.mxu0 0
    %379 = vmatpush1.bf16.msra.mxu0 %v358
    %380 = vmatprep.subr.bf16.mxu0 0
    %381 = vmatpush1.bf16.msra.mxu0 %v359
    %382 = vmatprep.subr.bf16.mxu0 0
    %383 = vmatpush1.bf16.msra.mxu0 %v360
    %384 = vmatprep.subr.bf16.mxu0 0
    %385 = vmatpush1.bf16.msra.mxu0 %v361
    %386 = vmatprep.subr.bf16.mxu0 0
    %387 = vmatpush1.bf16.msra.mxu0 0
    %388 = vmatprep.subr.bf16.mxu0 0
    %389 = vmatpush1.bf16.msra.mxu0 0
    %390 = vmatprep.subr.bf16.mxu0 0
    %391 = vmatpush1.bf16.msra.mxu0 0
    %392 = vmatprep.subr.bf16.mxu0 0
    %393 = vmatpush1.bf16.msra.mxu0 0
    %394 = vmatprep.subr.bf16.mxu0 0
    %395 = vmatpush1.bf16.msra.mxu0 0
    %396 = vmatprep.subr.bf16.mxu0 0
    %397 = vmatpush1.bf16.msra.mxu0 0
    %398 = vmatprep.subr.bf16.mxu0 0
    %399 = vmatpush1.bf16.msra.mxu0 0
    %400 = vmatprep.subr.bf16.mxu0 0
    %401 = vmatpush1.bf16.msra.mxu0 0
    %402 = vmatprep.mubr.bf16.mxu0 0
    %403 = vmatmul.mubr.bf16.gmra.mrb[0].mxu0 %v305
    %v404 = vpop.f32.mrb[0].mxu0
    %v405 = vadd.f32 0.0, %v404
    %v406 = vpop.f32.mrb[0].mxu0
    %v407 = vpop.f32.mrb[0].mxu0
    %v408 = vpop.f32.mrb[0].mxu0
    %409 = vdwg.mxu0
    %410 = vst [vmem:[#allocation8] sm:$0xff] %v405
    // Predicated region
    $region46: #{tpu_custom_call.1} parent=1 // pred_check
      _
    $region47: #{tpu_custom_call.1} parent=1 // pred_check_branch
      %412 = sbr.rel (0) target = $region49
    $region48: #{tpu_custom_call.1} parent=1 // pred_region
      %s414 = ssub.s32 128, 128
      %415 = vsyncadd [#allocation4], %s414
      %s417 = sshll.u32 [#allocation8], 4
      %s418 = int_to_ptr.vmem [resolvable:$true] %s417
      %420 = dma.vmem_to_hbm [thread:$0]  %s418, 128, %s8, [#allocation4]
    $region49: #{tpu_custom_call.1} parent=1 // pred_fallthru
      _
    // Predicated region
    $region50: #{tpu_custom_call.1} parent=1 // pred_check
      _
    $region51: #{tpu_custom_call.1} parent=1 // pred_check_branch
      %422 = sbr.rel (0) target = $region53
    $region52: #{tpu_custom_call.1} parent=1 // pred_region
      %423 = dma.done [#allocation4], 128
    $region53: #{tpu_custom_call.1} parent=1 // pred_fallthru
      _
    %424 = vsyncpa [#allocation3], 1
    %425 = vsyncpa [#allocation6], 1
    %426 = vsyncpa [#allocation4], 1

// kernel: tpu_custom_call.1
$region0: #{tpu_custom_call.1}
  #allocation0 [shape = 'u32[]', space=smem, size = 0x4, offset = 0x4, fixed_abs, tag = 'smem constant byte address 0x4 - core index']
  #allocation1 [shape = 'u32[144,128]{1,0:T(1,128)}', space=vmem, size = 0x12000, scoped, tag = 'internal scratch']
  %s0 = inlined_call_operand.hbm [shape: f32[8,32], index: 0, kind: input, shape index: {}]
  %s1 = inlined_call_operand.vmem [shape: f32[8,4], index: 1, kind: input, shape index: {}]
  %s2 = inlined_call_operand.vmem [shape: bf16[32,128], index: 2, kind: input, shape index: {}]
  %s3 = inlined_call_operand.vmem [shape: bf16[4,128], index: 3, kind: input, shape index: {}]
  %s4 = inlined_call_operand.vmem [shape: f32[1,128], index: 4, kind: input, shape index: {}]
  %s5 = inlined_call_operand.hbm [shape: bf16[128,128], index: 5, kind: input, shape index: {}]
  %s6 = inlined_call_operand.vmem [shape: f32[1,128], index: 6, kind: input, shape index: {}]
  %s7 = inlined_call_operand.hbm [shape: bf16[128,128], index: 7, kind: input, shape index: {}]
  %s8 = inlined_call_operand.hbm [shape: f32[8,128], index: 8, kind: output, shape index: {}]
  %s9 = sld [smem:[#allocation0]]
  $region54: #{tpu_custom_call.1} parent=0
    _
  %s11 = ssub.s32 1, %s9
  %s12 = scalar_select 0, %s11, %s9
  $region1: #{tpu_custom_call.1} parent=0
    #allocation2 [shape = 'u8[4096]{0}', space=vmem, size = 0x1000, scoped, tag = 'input window, operand 0, single buffered']
    #allocation3 [shape = 's32[1]{0}', space=sflag, size = 0x4, scoped, tag = 'scoped memory for tpu_custom_call.1']
    #allocation4 [shape = 's32[1]{0}', space=sflag, size = 0x4, scoped, tag = 'scoped memory for tpu_custom_call.1']
    #allocation5 [shape = 'u8[32768]{0}', space=vmem, size = 0x8000, scoped, tag = 'input window, operand 5, single buffered']
    #allocation6 [shape = 's32[1]{0}', space=sflag, size = 0x4, scoped, tag = 'scoped memory for tpu_custom_call.1']
    #allocation7 [shape = 'u8[32768]{0}', space=vmem, size = 0x8000, scoped, tag = 'input window, operand 7, single buffered']
    #allocation8 [shape = 'u8[4096]{0}', space=vmem, size = 0x1000, scoped, tag = 'output window, operand 0, single buffered']
    %13 = vsyncpa [#allocation3], 0
    %14 = vsyncpa [#allocation6], 0
    %15 = vsyncpa [#allocation4], 0
    // Predicated region
    $region2: #{tpu_custom_call.1} parent=1 // pred_check
      _
    $region3: #{tpu_custom_call.1} parent=1 // pred_check_branch
      %17 = sbr.rel (0) target = $region5
    $region4: #{tpu_custom_call.1} parent=1 // pred_region
      %s19 = ssub.s32 128, 128
      %20 = vsyncadd [#allocation3], %s19
      %s22 = sshll.u32 [#allocation2], 4
      %s23 = int_to_ptr.vmem [resolvable:$true] %s22
      %25 = dma.hbm_to_vmem [thread:$0]  %s0, 128, %s23, [#allocation3]
    $region5: #{tpu_custom_call.1} parent=1 // pred_fallthru
      _
    // Predicated region
    $region6: #{tpu_custom_call.1} parent=1 // pred_check
      _
    $region7: #{tpu_custom_call.1} parent=1 // pred_check_branch
      %27 = sbr.rel (0) target = $region9
    $region8: #{tpu_custom_call.1} parent=1 // pred_region
      _
    $region9: #{tpu_custom_call.1} parent=1 // pred_fallthru
      _
    // Predicated region
    $region10: #{tpu_custom_call.1} parent=1 // pred_check
      _
    $region11: #{tpu_custom_call.1} parent=1 // pred_check_branch
      %29 = sbr.rel (0) target = $region13
    $region12: #{tpu_custom_call.1} parent=1 // pred_region
      _
    $region13: #{tpu_custom_call.1} parent=1 // pred_fallthru
      _
    // Predicated region
    $region14: #{tpu_custom_call.1} parent=1 // pred_check
      _
    $region15: #{tpu_custom_call.1} parent=1 // pred_check_branch
      %31 = sbr.rel (0) target = $region17
    $region16: #{tpu_custom_call.1} parent=1 // pred_region
      _
    $region17: #{tpu_custom_call.1} parent=1 // pred_fallthru
      _
    // Predicated region
    $region18: #{tpu_custom_call.1} parent=1 // pred_check
      _
    $region19: #{tpu_custom_call.1} parent=1 // pred_check_branch
      %33 = sbr.rel (0) target = $region21
    $region20: #{tpu_custom_call.1} parent=1 // pred_region
      _
    $region21: #{tpu_custom_call.1} parent=1 // pred_fallthru
      _
    // Predicated region
    $region22: #{tpu_custom_call.1} parent=1 // pred_check
      _
    $region23: #{tpu_custom_call.1} parent=1 // pred_check_branch
      %35 = sbr.rel (0) target = $region25
    $region24: #{tpu_custom_call.1} parent=1 // pred_region
      %s37 = ssub.s32 1024, 1024
      %38 = vsyncadd [#allocation6], %s37
      %s39 = sshll.u32 [#allocation5], 4
      %s40 = int_to_ptr.vmem [resolvable:$true] %s39
      %45 = dma.hbm_to_vmem [thread:$0]  %s5, 1024, %s40, [#allocation6], 64, 64, 4
    $region25: #{tpu_custom_call.1} parent=1 // pred_fallthru
      _
    // Predicated region
    $region26: #{tpu_custom_call.1} parent=1 // pred_check
      _
    $region27: #{tpu_custom_call.1} parent=1 // pred_check_branch
      %47 = sbr.rel (0) target = $region29
    $region28: #{tpu_custom_call.1} parent=1 // pred_region
      _
    $region29: #{tpu_custom_call.1} parent=1 // pred_fallthru
      _
    // Predicated region
    $region30: #{tpu_custom_call.1} parent=1 // pred_check
      _
    $region31: #{tpu_custom_call.1} parent=1 // pred_check_branch
      %49 = sbr.rel (0) target = $region33
    $region32: #{tpu_custom_call.1} parent=1 // pred_region
      %s51 = ssub.s32 1024, 1024
      %52 = vsyncadd [#allocation6], %s51
      %s53 = sshll.u32 [#allocation7], 4
      %s54 = int_to_ptr.vmem [resolvable:$true] %s53
      %59 = dma.hbm_to_vmem [thread:$0]  %s7, 1024, %s54, [#allocation6], 64, 64, 4
    $region33: #{tpu_custom_call.1} parent=1 // pred_fallthru
      _
    // Predicated region
    $region34: #{tpu_custom_call.1} parent=1 // pred_check
      _
    $region35: #{tpu_custom_call.1} parent=1 // pred_check_branch
      %61 = sbr.rel (0) target = $region37
    $region36: #{tpu_custom_call.1} parent=1 // pred_region
      %62 = dma.done [#allocation3], 128
    $region37: #{tpu_custom_call.1} parent=1 // pred_fallthru
      _
    // Predicated region
    $region38: #{tpu_custom_call.1} parent=1 // pred_check
      _
    $region39: #{tpu_custom_call.1} parent=1 // pred_check_branch
      %64 = sbr.rel (0) target = $region41
    $region40: #{tpu_custom_call.1} parent=1 // pred_region
      %65 = dma.done [#allocation6], 1024
    $region41: #{tpu_custom_call.1} parent=1 // pred_fallthru
      _
    // Predicated region
    $region42: #{tpu_custom_call.1} parent=1 // pred_check
      _
    $region43: #{tpu_custom_call.1} parent=1 // pred_check_branch
      %67 = sbr.rel (0) target = $region45
    $region44: #{tpu_custom_call.1} parent=1 // pred_region
      %68 = dma.done [#allocation6], 1024
    $region45: #{tpu_custom_call.1} parent=1 // pred_fallthru
      _
    %v70 = vld [vmem:[#allocation2] sm:$0xff]
    %v71 = vpack.c.bf16 %v70, %v70
    %v72 = vld [vmem:[%s2] sm:$0xf]
    %v73 = vld [vmem:[%s2 + $0x4] sm:$0xf]
    %v74 = vld [vmem:[%s2 + $0x8] sm:$0xf]
    %v75 = vld [vmem:[%s2 + $0xc] sm:$0xf]
    %v76 = vld [vmem:[%s1] sm:$0xff]
    %v77 = vpack.c.bf16 %v76, %v76
    %v78 = vld [vmem:[%s3] sm:$0x3]
    %vm79 = vcmask 31744
    %v81 = vsel %vm79, %v77, 0
    %vm83 = vcmask 1041408
    %v85 = vsel %vm83, %v78, 0
    %87 = vmatprep.subr.bf16.mxu0 0
    %88 = vmatpush1.bf16.msra.mxu0 %v85
    %89 = vmatprep.subr.bf16.mxu0 0
    %90 = vmatpush1.bf16.msra.mxu0 0
    %91 = vmatprep.subr.bf16.mxu0 0
    %92 = vmatpush1.bf16.msra.mxu0 0
    %93 = vmatprep.subr.bf16.mxu0 0
    %94 = vmatpush1.bf16.msra.mxu0 0
    %95 = vmatprep.subr.bf16.mxu0 0
    %96 = vmatpush1.bf16.msra.mxu0 0
    %97 = vmatprep.subr.bf16.mxu0 0
    %98 = vmatpush1.bf16.msra.mxu0 0
    %99 = vmatprep.subr.bf16.mxu0 0
    %100 = vmatpush1.bf16.msra.mxu0 0
    %101 = vmatprep.subr.bf16.mxu0 0
    %102 = vmatpush1.bf16.msra.mxu0 0
    %103 = vmatprep.subr.bf16.mxu0 0
    %104 = vmatpush1.bf16.msra.mxu0 0
    %105 = vmatprep.subr.bf16.mxu0 0
    %106 = vmatpush1.bf16.msra.mxu0 0
    %107 = vmatprep.subr.bf16.mxu0 0
    %108 = vmatpush1.bf16.msra.mxu0 0
    %109 = vmatprep.subr.bf16.mxu0 0
    %110 = vmatpush1.bf16.msra.mxu0 0
    %111 = vmatprep.subr.bf16.mxu0 0
    %112 = vmatpush1.bf16.msra.mxu0 0
    %113 = vmatprep.subr.bf16.mxu0 0
    %114 = vmatpush1.bf16.msra.mxu0 0
    %115 = vmatprep.subr.bf16.mxu0 0
    %116 = vmatpush1.bf16.msra.mxu0 0
    %117 = vmatprep.subr.bf16.mxu0 0
    %118 = vmatpush1.bf16.msra.mxu0 0
    %119 = vmatprep.mubr.bf16.mxu0 0
    %120 = vmatmul.mubr.bf16.gmra.mrb[0].mxu0 %v81
    %v121 = vpop.f32.mrb[0].mxu0
    %v122 = vadd.f32 0.0, %v121
    %v123 = vpop.f32.mrb[0].mxu0
    %v124 = vpop.f32.mrb[0].mxu0
    %v125 = vpop.f32.mrb[0].mxu0
    %126 = vdwg.mxu0
    %v131 = vunpack.c.l.b16 %v72
    %v132 = vunpack.c.l.b16 %v73
    %v133 = vunpack.c.l.b16 %v74
    %v134 = vunpack.c.l.b16 %v75
    %v135 = vpack.c.b16 %v132, %v131
    %v136 = vpack.c.b16 %v134, %v133
    %vm139 = vcmask 261120
    %v141 = vsel %vm139, %v71, 0
    %143 = vmatprep.subr.bf16.mxu0 0
    %144 = vmatpush1.bf16.msra.mxu0 %v135
    %145 = vmatprep.subr.bf16.mxu0 0
    %146 = vmatpush1.bf16.msra.mxu0 %v136
    %147 = vmatprep.subr.bf16.mxu0 0
    %148 = vmatpush1.bf16.msra.mxu0 0
    %149 = vmatprep.subr.bf16.mxu0 0
    %150 = vmatpush1.bf16.msra.mxu0 0
    %151 = vmatprep.subr.bf16.mxu0 0
    %152 = vmatpush1.bf16.msra.mxu0 0
    %153 = vmatprep.subr.bf16.mxu0 0
    %154 = vmatpush1.bf16.msra.mxu0 0
    %155 = vmatprep.subr.bf16.mxu0 0
    %156 = vmatpush1.bf16.msra.mxu0 0
    %157 = vmatprep.subr.bf16.mxu0 0
    %158 = vmatpush1.bf16.msra.mxu0 0
    %159 = vmatprep.subr.bf16.mxu0 0
    %160 = vmatpush1.bf16.msra.mxu0 0
    %161 = vmatprep.subr.bf16.mxu0 0
    %162 = vmatpush1.bf16.msra.mxu0 0
    %163 = vmatprep.subr.bf16.mxu0 0
    %164 = vmatpush1.bf16.msra.mxu0 0
    %165 = vmatprep.subr.bf16.mxu0 0
    %166 = vmatpush1.bf16.msra.mxu0 0
    %167 = vmatprep.subr.bf16.mxu0 0
    %168 = vmatpush1.bf16.msra.mxu0 0
    %169 = vmatprep.subr.bf16.mxu0 0
    %170 = vmatpush1.bf16.msra.mxu0 0
    %171 = vmatprep.subr.bf16.mxu0 0
    %172 = vmatpush1.bf16.msra.mxu0 0
    %173 = vmatprep.subr.bf16.mxu0 0
    %174 = vmatpush1.bf16.msra.mxu0 0
    %175 = vmatprep.mubr.bf16.mxu0 0
    %176 = vmatmul.mubr.bf16.gmra.mrb[0].mxu0 %v141
    %v177 = vpop.f32.mrb[0].mxu0
    %v178 = vadd.f32 %v122, %v177
    %v179 = vpop.f32.mrb[0].mxu0
    %v180 = vpop.f32.mrb[0].mxu0
    %v181 = vpop.f32.mrb[0].mxu0
    %182 = vdwg.mxu0
    %v183 = vld [vmem:[%s4] sm:$0x1]
    %v185 = vlaneseq
    %v186 = vshrl.u32 %v185, 7
    %v187 = vsub.s32 0, %v186
    %v188 = vrot.slane %v183, %v187
    %v190 = vadd.f32 %v178, %v188
    %v191 = vmax.f32 %v190, 0.0
    %v192 = vpack.c.bf16 %v191, %v191
    %v193 = vld [vmem:[#allocation5] sm:$0xf]
    %v194 = vld [vmem:[#allocation5 + $0x4] sm:$0xf]
    %v195 = vld [vmem:[#allocation5 + $0x8] sm:$0xf]
    %v196 = vld [vmem:[#allocation5 + $0xc] sm:$0xf]
    %v197 = vld [vmem:[#allocation5 + $0x10] sm:$0xf]
    %v198 = vld [vmem:[#allocation5 + $0x14] sm:$0xf]
    %v199 = vld [vmem:[#allocation5 + $0x18] sm:$0xf]
    %v200 = vld [vmem:[#allocation5 + $0x1c] sm:$0xf]
    %v201 = vld [vmem:[#allocation5 + $0x20] sm:$0xf]
    %v202 = vld [vmem:[#allocation5 + $0x24] sm:$0xf]
    %v203 = vld [vmem:[#allocation5 + $0x28] sm:$0xf]
    %v204 = vld [vmem:[#allocation5 + $0x2c] sm:$0xf]
    %v205 = vld [vmem:[#allocation5 + $0x30] sm:$0xf]
    %v206 = vld [vmem:[#allocation5 + $0x34] sm:$0xf]
    %v207 = vld [vmem:[#allocation5 + $0x38] sm:$0xf]
    %v208 = vld [vmem:[#allocation5 + $0x3c] sm:$0xf]
    %v209 = vld [vmem:[%s6] sm:$0x1]
    %v211 = vlaneseq
    %v212 = vshrl.u32 %v211, 7
    %v213 = vsub.s32 0, %v212
    %v214 = vrot.slane %v209, %v213
    %v232 = vunpack.c.l.b16 %v193
    %v233 = vunpack.c.l.b16 %v194
    %v234 = vunpack.c.l.b16 %v195
    %v235 = vunpack.c.l.b16 %v196
    %v236 = vunpack.c.l.b16 %v197
    %v237 = vunpack.c.l.b16 %v198
    %v238 = vunpack.c.l.b16 %v199
    %v239 = vunpack.c.l.b16 %v200
    %v240 = vunpack.c.l.b16 %v201
    %v241 = vunpack.c.l.b16 %v202
    %v242 = vunpack.c.l.b16 %v203
    %v243 = vunpack.c.l.b16 %v204
    %v244 = vunpack.c.l.b16 %v205
    %v245 = vunpack.c.l.b16 %v206
    %v246 = vunpack.c.l.b16 %v207
    %v247 = vunpack.c.l.b16 %v208
    %v248 = vpack.c.b16 %v233, %v232
    %v249 = vpack.c.b16 %v235, %v234
    %v250 = vpack.c.b16 %v237, %v236
    %v251 = vpack.c.b16 %v239, %v238
    %v252 = vpack.c.b16 %v241, %v240
    %v253 = vpack.c.b16 %v243, %v242
    %v254 = vpack.c.b16 %v245, %v244
    %v255 = vpack.c.b16 %v247, %v246
    %264 = vmatprep.subr.bf16.mxu0 0
    %265 = vmatpush1.bf16.msra.mxu0 %v248
    %266 = vmatprep.subr.bf16.mxu0 0
    %267 = vmatpush1.bf16.msra.mxu0 %v249
    %268 = vmatprep.subr.bf16.mxu0 0
    %269 = vmatpush1.bf16.msra.mxu0 %v250
    %270 = vmatprep.subr.bf16.mxu0 0
    %271 = vmatpush1.bf16.msra.mxu0 %v251
    %272 = vmatprep.subr.bf16.mxu0 0
    %273 = vmatpush1.bf16.msra.mxu0 %v252
    %274 = vmatprep.subr.bf16.mxu0 0
    %275 = vmatpush1.bf16.msra.mxu0 %v253
    %276 = vmatprep.subr.bf16.mxu0 0
    %277 = vmatpush1.bf16.msra.mxu0 %v254
    %278 = vmatprep.subr.bf16.mxu0 0
    %279 = vmatpush1.bf16.msra.mxu0 %v255
    %280 = vmatprep.subr.bf16.mxu0 0
    %281 = vmatpush1.bf16.msra.mxu0 0
    %282 = vmatprep.subr.bf16.mxu0 0
    %283 = vmatpush1.bf16.msra.mxu0 0
    %284 = vmatprep.subr.bf16.mxu0 0
    %285 = vmatpush1.bf16.msra.mxu0 0
    %286 = vmatprep.subr.bf16.mxu0 0
    %287 = vmatpush1.bf16.msra.mxu0 0
    %288 = vmatprep.subr.bf16.mxu0 0
    %289 = vmatpush1.bf16.msra.mxu0 0
    %290 = vmatprep.subr.bf16.mxu0 0
    %291 = vmatpush1.bf16.msra.mxu0 0
    %292 = vmatprep.subr.bf16.mxu0 0
    %293 = vmatpush1.bf16.msra.mxu0 0
    %294 = vmatprep.subr.bf16.mxu0 0
    %295 = vmatpush1.bf16.msra.mxu0 0
    %296 = vmatprep.mubr.bf16.mxu0 0
    %297 = vmatmul.mubr.bf16.gmra.mrb[0].mxu0 %v192
    %v298 = vpop.f32.mrb[0].mxu0
    %v299 = vadd.f32 %v214, %v298
    %v300 = vpop.f32.mrb[0].mxu0
    %v301 = vpop.f32.mrb[0].mxu0
    %v302 = vpop.f32.mrb[0].mxu0
    %303 = vdwg.mxu0
    %v304 = vmax.f32 %v299, 0.0
    %v305 = vpack.c.bf16 %v304, %v304
    %v306 = vld [vmem:[#allocation7] sm:$0xf]
    %v307 = vld [vmem:[#allocation7 + $0x4] sm:$0xf]
    %v308 = vld [vmem:[#allocation7 + $0x8] sm:$0xf]
    %v309 = vld [vmem:[#allocation7 + $0xc] sm:$0xf]
    %v310 = vld [vmem:[#allocation7 + $0x10] sm:$0xf]
    %v311 = vld [vmem:[#allocation7 + $0x14] sm:$0xf]
    %v312 = vld [vmem:[#allocation7 + $0x18] sm:$0xf]
    %v313 = vld [vmem:[#allocation7 + $0x1c] sm:$0xf]
    %v314 = vld [vmem:[#allocation7 + $0x20] sm:$0xf]
    %v315 = vld [vmem:[#allocation7 + $0x24] sm:$0xf]
    %v316 = vld [vmem:[#allocation7 + $0x28] sm:$0xf]
    %v317 = vld [vmem:[#allocation7 + $0x2c] sm:$0xf]
    %v318 = vld [vmem:[#allocation7 + $0x30] sm:$0xf]
    %v319 = vld [vmem:[#allocation7 + $0x34] sm:$0xf]
    %v320 = vld [vmem:[#allocation7 + $0x38] sm:$0xf]
    %v321 = vld [vmem:[#allocation7 + $0x3c] sm:$0xf]
    %v338 = vunpack.c.l.b16 %v306
    %v339 = vunpack.c.l.b16 %v307
    %v340 = vunpack.c.l.b16 %v308
    %v341 = vunpack.c.l.b16 %v309
    %v342 = vunpack.c.l.b16 %v310
    %v343 = vunpack.c.l.b16 %v311
    %v344 = vunpack.c.l.b16 %v312
    %v345 = vunpack.c.l.b16 %v313
    %v346 = vunpack.c.l.b16 %v314
    %v347 = vunpack.c.l.b16 %v315
    %v348 = vunpack.c.l.b16 %v316
    %v349 = vunpack.c.l.b16 %v317
    %v350 = vunpack.c.l.b16 %v318
    %v351 = vunpack.c.l.b16 %v319
    %v352 = vunpack.c.l.b16 %v320
    %v353 = vunpack.c.l.b16 %v321
    %v354 = vpack.c.b16 %v339, %v338
    %v355 = vpack.c.b16 %v341, %v340
    %v356 = vpack.c.b16 %v343, %v342
    %v357 = vpack.c.b16 %v345, %v344
    %v358 = vpack.c.b16 %v347, %v346
    %v359 = vpack.c.b16 %v349, %v348
    %v360 = vpack.c.b16 %v351, %v350
    %v361 = vpack.c.b16 %v353, %v352
    %370 = vmatprep.subr.bf16.mxu0 0
    %371 = vmatpush1.bf16.msra.mxu0 %v354
    %372 = vmatprep.subr.bf16.mxu0 0
    %373 = vmatpush1.bf16.msra.mxu0 %v355
    %374 = vmatprep.subr.bf16.mxu0 0
    %375 = vmatpush1.bf16.msra.mxu0 %v356
    %376 = vmatprep.subr.bf16.mxu0 0
    %377 = vmatpush1.bf16.msra.mxu0 %v357
    %378 = vmatprep.subr.bf16.mxu0 0
    %379 = vmatpush1.bf16.msra.mxu0 %v358
    %380 = vmatprep.subr.bf16.mxu0 0
    %381 = vmatpush1.bf16.msra.mxu0 %v359
    %382 = vmatprep.subr.bf16.mxu0 0
    %383 = vmatpush1.bf16.msra.mxu0 %v360
    %384 = vmatprep.subr.bf16.mxu0 0
    %385 = vmatpush1.bf16.msra.mxu0 %v361
    %386 = vmatprep.subr.bf16.mxu0 0
    %387 = vmatpush1.bf16.msra.mxu0 0
    %388 = vmatprep.subr.bf16.mxu0 0
    %389 = vmatpush1.bf16.msra.mxu0 0
    %390 = vmatprep.subr.bf16.mxu0 0
    %391 = vmatpush1.bf16.msra.mxu0 0
    %392 = vmatprep.subr.bf16.mxu0 0
    %393 = vmatpush1.bf16.msra.mxu0 0
    %394 = vmatprep.subr.bf16.mxu0 0
    %395 = vmatpush1.bf16.msra.mxu0 0
    %396 = vmatprep.subr.bf16.mxu0 0
    %397 = vmatpush1.bf16.msra.mxu0 0
    %398 = vmatprep.subr.bf16.mxu0 0
    %399 = vmatpush1.bf16.msra.mxu0 0
    %400 = vmatprep.subr.bf16.mxu0 0
    %401 = vmatpush1.bf16.msra.mxu0 0
    %402 = vmatprep.mubr.bf16.mxu0 0
    %403 = vmatmul.mubr.bf16.gmra.mrb[0].mxu0 %v305
    %v404 = vpop.f32.mrb[0].mxu0
    %v405 = vadd.f32 0.0, %v404
    %v406 = vpop.f32.mrb[0].mxu0
    %v407 = vpop.f32.mrb[0].mxu0
    %v408 = vpop.f32.mrb[0].mxu0
    %409 = vdwg.mxu0
    %410 = vst [vmem:[#allocation8] sm:$0xff] %v405
    // Predicated region
    $region46: #{tpu_custom_call.1} parent=1 // pred_check
      _
    $region47: #{tpu_custom_call.1} parent=1 // pred_check_branch
      %412 = sbr.rel (0) target = $region49
    $region48: #{tpu_custom_call.1} parent=1 // pred_region
      %s414 = ssub.s32 128, 128
      %415 = vsyncadd [#allocation4], %s414
      %s417 = sshll.u32 [#allocation8], 4
      %s418 = int_to_ptr.vmem [resolvable:$true] %s417
      %420 = dma.vmem_to_hbm [thread:$0]  %s418, 128, %s8, [#allocation4]
    $region49: #{tpu_custom_call.1} parent=1 // pred_fallthru
      _
    // Predicated region
    $region50: #{tpu_custom_call.1} parent=1 // pred_check
      _
    $region51: #{tpu_custom_call.1} parent=1 // pred_check_branch
      %422 = sbr.rel (0) target = $region53
    $region52: #{tpu_custom_call.1} parent=1 // pred_region
      %423 = dma.done [#allocation4], 128
    $region53: #{tpu_custom_call.1} parent=1 // pred_fallthru
      _
    %424 = vsyncpa [#allocation3], 1
    %425 = vsyncpa [#allocation6], 1
    %426 = vsyncpa [#allocation4], 1

</llo_original>
